<compile_context>
chip_gen: v6e
topology: v6e:2x2x1
jax: 0.10.0
libtpu: 0.0.40
codegen_flags: <defaults>
</compile_context>

<pallas_src>
import functools

import jax
import jax.numpy as jnp
from jax import lax
from jax.experimental import pallas as pl
from jax.experimental.pallas import tpu as pltpu

EPS = 1e-5
SCALE = 2.0  # cls_type='0000' => temp=False => fixed scale factor


def _round_up(x, m):
    return (x + m - 1) // m * m


@functools.lru_cache(maxsize=None)
def _vmem_params():
    """(vmem_limit_bytes, tile_budget_bytes), generation aware."""
    try:
        cap = int(pltpu.get_tpu_info().vmem_capacity_bytes)
    except Exception:  # robust fallback if the query is unavailable
        cap = 128 * 1024 * 1024
    if cap >= 100 * 1024 * 1024:
        # v5e / v6e: 128 MiB physical VMEM -> generous scoped limit and tile budget.
        return 64 * 1024 * 1024, 44 * 1024 * 1024
    # v7x: 64 MiB per TensorCore -> keep limit <= ~48 MiB, budget ~26 MiB.
    return 48 * 1024 * 1024, 26 * 1024 * 1024


def _tile_sizes(C, N, HW, x_item, w_item, o_item, vmem_budget):
    """Pick (ts, n_s, nt, n_n): spatial tile / #spatial tiles / class tile / #class tiles."""
    # --- class (weight) tiling: only for very large heads ---
    w_resident = 2 * N * C * w_item  # double-buffered, but DMA'd once (constant index_map)
    if w_resident <= min(8 * 1024 * 1024, vmem_budget // 3):
        nt = N
    else:
        nt = min(_round_up(min(N, 256), 8), _round_up(N, 8))
    n_n = pl.cdiv(N, nt)
    w_block_bytes = 2 * nt * C * w_item

    # --- spatial tile: target ~4 MiB x slab, capped by VMEM budget and HW ---
    target_bytes = 4 * 1024 * 1024
    ts_target = max(128, (target_bytes // max(C * x_item, 1)) // 128 * 128)
    # Bytes per spatial column live in VMEM: double-buffered x & out blocks plus
    # in-kernel f32 temporaries (x cast, x_norm, possible matmul cast; cos + out cast).
    per_col = 2 * C * x_item + 2 * nt * o_item + 3 * C * 4 + 2 * nt * 4
    ts_budget = max(128, ((vmem_budget - w_block_bytes) // max(per_col, 1)) // 128 * 128)
    hw_cap = _round_up(HW, 128)
    ts = max(128, min(ts_target, ts_budget, hw_cap))
    n_s = pl.cdiv(HW, ts)
    return ts, n_s, nt, n_n


def coscls_kernel(x_ref, w_ref, o_ref, *, matmul_dtype):
    # x_ref: (1, C, ts) spatial slab; w_ref: (nt, C) weight tile; o_ref: (1, nt, ts).
    x = x_ref[0]
    xf = x if x.dtype == jnp.float32 else x.astype(jnp.float32)     # (C, ts)
    sumsq = jnp.sum(xf * xf, axis=0, keepdims=True)                 # (1, ts), reduce over C
    # 2.0 * x / max(||x||, eps)  ==  x * (2.0 * rsqrt(max(sumsq, eps^2)))  (scale folded in)
    inv = SCALE * lax.rsqrt(jnp.maximum(sumsq, EPS * EPS))
    x_norm = xf * inv                                               # (C, ts)

    mm_dtype = jnp.dtype(jnp.float32 if matmul_dtype is None else matmul_dtype)
    w = w_ref[...]
    if w.dtype != mm_dtype:
        w = w.astype(mm_dtype)
    if x_norm.dtype != mm_dtype:
        x_norm = x_norm.astype(mm_dtype)
    cos = jnp.dot(w, x_norm, preferred_element_type=jnp.float32)    # (nt, ts) on MXU
    o_ref[0] = cos.astype(o_ref.dtype)


@functools.partial(jax.jit, static_argnames=("matmul_dtype",))
def coscls_forward(x_nchw, weight_oi, *, matmul_dtype=None):
    """x_nchw: (B, C, H, W). weight_oi: (n_classes, C) (Conv2d 1x1 weight squeezed)."""
    B, C, H, W = x_nchw.shape
    N = weight_oi.shape[0]
    HW = H * W

    vmem_limit, vmem_budget = _vmem_params()
    ts, n_s, nt, n_n = _tile_sizes(
        C, N, HW,
        x_item=x_nchw.dtype.itemsize,
        w_item=weight_oi.dtype.itemsize,
        o_item=x_nchw.dtype.itemsize,
        vmem_budget=vmem_budget,
    )

    # NCHW -> (B, C, HW): pure reshape, no transpose, no pad.
    x3 = x_nchw.reshape(B, C, HW)

    kernel = functools.partial(coscls_kernel, matmul_dtype=matmul_dtype)

    out = pl.pallas_call(
        kernel,
        out_shape=jax.ShapeDtypeStruct((B, N, HW), x_nchw.dtype),
        grid_spec=pltpu.PrefetchScalarGridSpec(
            num_scalar_prefetch=0,
            # Large spatial axis first (megacore split stays balanced even for B=1/odd),
            # class-tile axis innermost so the x slab is reused across it (usually extent 1).
            grid=(n_s, B, n_n),
            in_specs=[
                pl.BlockSpec((1, C, ts), lambda s, b, n: (b, 0, s)),   # x spatial slab
                pl.BlockSpec((nt, C), lambda s, b, n: (n, 0)),         # weight tile (resident if n_n==1)
            ],
            out_specs=pl.BlockSpec((1, nt, ts), lambda s, b, n: (b, n, s)),
        ),
        compiler_params=pltpu.CompilerParams(
            dimension_semantics=("parallel", "parallel", "arbitrary"),
            vmem_limit_bytes=vmem_limit,
        ),
    )(x3, weight_oi)

    return out.reshape(B, N, H, W)


def reference_forward(x_nchw, weight_oi):
    # Pure-JAX reference mirroring the PyTorch module.
    xf = x_nchw.astype(jnp.float32)
    norm = jnp.sqrt(jnp.sum(xf * xf, axis=1, keepdims=True))
    x_norm = xf / jnp.maximum(norm, EPS)
    cos = jnp.einsum("bchw,nc->bnhw", x_norm, weight_oi.astype(jnp.float32))
    return SCALE * cos


if __name__ == "__main__":
    key = jax.random.PRNGKey(0)
    kx, kw, kx2 = jax.random.split(key, 3)

    # Main check: batch=2, in_dim=4, spatial=16x16, n_classes=2.
    B, C, H, W = 2, 4, 16, 16
    n_classes = 2
    x = jax.random.normal(kx, (B, C, H, W), dtype=jnp.float32)
    weight = 0.1 * jax.random.normal(kw, (n_classes, C), dtype=jnp.float32)

    out = jax.block_until_ready(coscls_forward(x, weight))
    ref = reference_forward(x, weight)
    assert out.shape == (B, n_classes, H, W)
    assert jnp.allclose(out, ref, atol=1e-4, rtol=1e-4)

    # Tail handling: H*W not a multiple of 128 (15x15 = 225) -> single partial block,
    # no wrapper pad/slice.
    x2 = jax.random.normal(kx2, (B, C, 15, 15), dtype=jnp.float32)
    out2 = jax.block_until_ready(coscls_forward(x2, weight))
    ref2 = reference_forward(x2, weight)
    assert out2.shape == (B, n_classes, 15, 15)
    assert jnp.allclose(out2, ref2, atol=1e-4, rtol=1e-4)

    # bf16-MXU path (opt-in for large heads, esp. v5e): f32 accumulation, looser tolerance.
    out3 = jax.block_until_ready(coscls_forward(x, weight, matmul_dtype=jnp.bfloat16))
    assert out3.shape == (B, n_classes, H, W)
    assert jnp.allclose(out3, ref, atol=5e-2, rtol=5e-2)

    print("KERNEL_OK")
</pallas_src>

<mosaic_0001>
module attributes {stable_mosaic.version = 11 : i64} {
  func.func @coscls_kernel(%arg0: i32, %arg1: i32, %arg2: i32, %arg3: memref<1x4x256xf32, #tpu.memory_space<vmem>>, %arg4: memref<2x4xf32, #tpu.memory_space<vmem>>, %arg5: memref<1x2x256xf32, #tpu.memory_space<vmem>>) attributes {dimension_semantics = [#tpu.dimension_semantics<parallel>, #tpu.dimension_semantics<parallel>, #tpu.dimension_semantics<arbitrary>], iteration_bounds = array<i64: 1, 2, 1>, scalar_prefetch = 0 : i64, scratch_operands = 0 : i64, tpu.core_type = #tpu.core_type<tc>, window_params = [{transform_indices = @transform_0, window_bounds = array<i64: 1, 4, 256>}, {transform_indices = @transform_1, window_bounds = array<i64: 2, 4>}, {transform_indices = @transform_2, window_bounds = array<i64: 1, 2, 256>}]} {
    %c0 = arith.constant 0 : index
    %c0_0 = arith.constant 0 : index
    %c0_1 = arith.constant 0 : index
    %0 = vector.load %arg3[%c0, %c0_0, %c0_1] : memref<1x4x256xf32, #tpu.memory_space<vmem>>, vector<1x4x256xf32>
    %1 = vector.shape_cast %0 : vector<1x4x256xf32> to vector<4x256xf32>
    %2 = arith.mulf %1, %1 : vector<4x256xf32>
    %cst = arith.constant dense<0.000000e+00> : vector<256xf32>
    %3 = vector.multi_reduction <add>, %2, %cst [0] : vector<4x256xf32> to vector<256xf32>
    %4 = vector.shape_cast %3 : vector<256xf32> to vector<1x256xf32>
    %cst_2 = arith.constant 1.000000e-10 : f32
    %5 = vector.broadcast %cst_2 : f32 to vector<1x256xf32>
    %6 = arith.maximumf %4, %5 : vector<1x256xf32>
    %7 = math.rsqrt %6 : vector<1x256xf32>
    %cst_3 = arith.constant 2.000000e+00 : f32
    %8 = vector.broadcast %cst_3 : f32 to vector<1x256xf32>
    %9 = arith.mulf %8, %7 : vector<1x256xf32>
    %10 = vector.broadcast %9 : vector<1x256xf32> to vector<4x256xf32>
    %11 = arith.mulf %1, %10 : vector<4x256xf32>
    %c0_4 = arith.constant 0 : index
    %c0_5 = arith.constant 0 : index
    %12 = vector.load %arg4[%c0_4, %c0_5] : memref<2x4xf32, #tpu.memory_space<vmem>>, vector<2x4xf32>
    %cst_6 = arith.constant dense<0.000000e+00> : vector<2x256xf32>
    %13 = tpu.matmul %12, %11, %cst_6 {dimension_numbers = #tpu.dot_dimension_numbers<[1], [0], [0], [1], [0, 0, 1, 1], [], []>} : vector<2x4xf32>, vector<4x256xf32>, vector<2x256xf32> -> vector<2x256xf32>
    %c0_7 = arith.constant 0 : index
    %c0_8 = arith.constant 0 : index
    %c0_9 = arith.constant 0 : index
    %14 = vector.load %arg5[%c0_7, %c0_8, %c0_9] : memref<1x2x256xf32, #tpu.memory_space<vmem>>, vector<1x2x256xf32>
    %15 = vector.shape_cast %14 : vector<1x2x256xf32> to vector<2x256xf32>
    %16 = vector.shape_cast %13 : vector<2x256xf32> to vector<1x2x256xf32>
    tpu.vector_store %arg5[%c0_7, %c0_8, %c0_9], %16 {strides = array<i32>} : memref<1x2x256xf32, #tpu.memory_space<vmem>>, vector<1x2x256xf32>,
    return
  }
  func.func @transform_0(%arg0: i32, %arg1: i32, %arg2: i32) -> (i32, i32, i32) {
    %c0_i32 = arith.constant 0 : i32
    %c0_i32_0 = arith.constant 0 : i32
    return %arg1, %c0_i32, %arg0 : i32, i32, i32
  }
  func.func @transform_1(%arg0: i32, %arg1: i32, %arg2: i32) -> (i32, i32) {
    %c0_i32 = arith.constant 0 : i32
    %c0_i32_0 = arith.constant 0 : i32
    return %arg2, %c0_i32 : i32, i32
  }
  func.func @transform_2(%arg0: i32, %arg1: i32, %arg2: i32) -> (i32, i32, i32) {
    %c0_i32 = arith.constant 0 : i32
    return %arg1, %arg2, %arg0 : i32, i32, i32
  }
}

</mosaic_0001>

<llo_original>
// kernel: coscls_forward.1
$region0: #{coscls_forward.1}
  #allocation0 [shape = 'u32[]', space=smem, size = 0x4, offset = 0x4, fixed_abs, tag = 'smem constant byte address 0x4 - core index']
  #allocation1 [shape = 'u32[144,128]{1,0:T(1,128)}', space=vmem, size = 0x12000, scoped, tag = 'internal scratch']
  %s0 = inlined_call_operand.vmem [shape: f32[2,4,256], index: 0, kind: input, shape index: {}]
  %s1 = inlined_call_operand.vmem [shape: f32[2,4], index: 1, kind: input, shape index: {}]
  %s2 = inlined_call_operand.vmem [shape: f32[2,2,256], index: 2, kind: output, shape index: {}]
  %s3 = sld [smem:[#allocation0]]
  $region41: #{coscls_forward.1} parent=0
    _
  %s5 = ssub.s32 1, %s3
  %s6 = scalar_select 0, %s5, %s3
  loop: start=0, step=1, limit=4
  $region2: #{coscls_forward.1} parent=0 // loop_pre_header
    _
  $region3: #{coscls_forward.1} parent=0 // loop_header
    %s8 = sphi 0, %s12
    %p9 = scmp.ge.s32.totalorder %s8, 4
    %s15 = sphi 0, %s34
    %s16 = sphi 0, %s30
    %s17 = sphi 0, %s26
    %s18 = sphi 0, %s15
    %s19 = sphi 0, %s16
    %s20 = sphi 0, %s17
    %s21 = sphi 0, %s18
    %s22 = sphi 0, %s19
    %s23 = sphi 0, %s20
    %s39 = sphi 0, %s41
    %s42 = sphi 0, %s39
    %s43 = sphi 0, %s42
    %s59 = sphi 0, %s43
    %s65 = sphi 0, %s67
    %s68 = sphi 0, %s65
    %s69 = sphi 0, %s68
    %s85 = sphi 0, %s69
    %s95 = sphi 0, %s97
    %s98 = sphi 0, %s95
    %s99 = sphi 0, %s98
    %s115 = sphi 0, %s99
  $region4: #{coscls_forward.1} parent=0 // loop_header_branch
    %11 = sbr.rel (%p9) target = $region8
  $region5: #{coscls_forward.1} parent=0 // loop_body
    %s13 = ssub.s32 %s8, 1
    %s14 = ssub.s32 %s8, 2
    %s24 = sadd.s32 1, %s17
    %p25 = scmp.ge.s32.totalorder %s24, 1
    %s26 = scalar_select %p25, 0, %s24
    %s27 = sadd.s32 1, %s16
    %s28 = scalar_select %p25, %s27, %s16
    %p29 = scmp.ge.s32.totalorder %s28, 2
    %s30 = scalar_select %p29, 0, %s28
    %s31 = sadd.s32 1, %s15
    %s32 = scalar_select %p29, %s31, %s15
    %p33 = scmp.ge.s32.totalorder %s32, 1
    %s34 = scalar_select %p33, 0, %s32
    %s35 = ssub.s32 %s16, %s30
    %s36 = ssub.s32 %s15, %s34
    %s37 = sor.u32 %s35, %s36
    %p38 = scmp.eq.s32.totalorder %s37, 0
    %s40 = sadd.s32 %s39, 1
    %s41 = scalar_select %p38, %s39, %s40
    %p44 = pneg %p38
    %p45 = scmp.eq.s32.totalorder %s8, 1
    %p46 = por %p44, %p45
    %p47 = scmp.ne.s32.totalorder %s39, %s42
    %p48 = scmp.eq.s32.totalorder %s8, 0
    %p49 = por %p47, %p48
    %p50 = scmp.ne.s32.totalorder %s39, %s42
    %p51 = scmp.eq.s32.totalorder %s13, 1
    %p52 = por %p50, %p51
    %p53 = scmp.ne.s32.totalorder %s42, %s43
    %p54 = scmp.eq.s32.totalorder %s13, 0
    %p55 = por %p53, %p54
    %p56 = scmp.ne.s32.totalorder %s42, %s43
    %p57 = scmp.eq.s32.totalorder %s14, 1
    %p58 = por %p56, %p57
    %p60 = scmp.ne.s32.totalorder %s43, %s59
    %p61 = scmp.eq.s32.totalorder %s14, 0
    %p62 = por %p60, %p61
    %s63 = ssub.s32 %s17, %s26
    %p64 = scmp.eq.s32.totalorder %s63, 0
    %s66 = sadd.s32 %s65, 1
    %s67 = scalar_select %p64, %s65, %s66
    %p70 = pneg %p64
    %p71 = scmp.eq.s32.totalorder %s8, 1
    %p72 = por %p70, %p71
    %p73 = scmp.ne.s32.totalorder %s65, %s68
    %p74 = scmp.eq.s32.totalorder %s8, 0
    %p75 = por %p73, %p74
    %p76 = scmp.ne.s32.totalorder %s65, %s68
    %p77 = scmp.eq.s32.totalorder %s13, 1
    %p78 = por %p76, %p77
    %p79 = scmp.ne.s32.totalorder %s68, %s69
    %p80 = scmp.eq.s32.totalorder %s13, 0
    %p81 = por %p79, %p80
    %p82 = scmp.ne.s32.totalorder %s68, %s69
    %p83 = scmp.eq.s32.totalorder %s14, 1
    %p84 = por %p82, %p83
    %p86 = scmp.ne.s32.totalorder %s69, %s85
    %p87 = scmp.eq.s32.totalorder %s14, 0
    %p88 = por %p86, %p87
    %s89 = ssub.s32 %s16, %s30
    %s90 = ssub.s32 %s17, %s26
    %s91 = sor.u32 %s89, %s90
    %s92 = ssub.s32 %s15, %s34
    %s93 = sor.u32 %s91, %s92
    %p94 = scmp.eq.s32.totalorder %s93, 0
    %s96 = sadd.s32 %s95, 1
    %s97 = scalar_select %p94, %s95, %s96
    %p100 = pneg %p94
    %p101 = scmp.eq.s32.totalorder %s8, 1
    %p102 = por %p100, %p101
    %p103 = scmp.ne.s32.totalorder %s95, %s98
    %p104 = scmp.eq.s32.totalorder %s8, 0
    %p105 = por %p103, %p104
    %p106 = scmp.ne.s32.totalorder %s95, %s98
    %p107 = scmp.eq.s32.totalorder %s13, 1
    %p108 = por %p106, %p107
    %p109 = scmp.ne.s32.totalorder %s98, %s99
    %p110 = scmp.eq.s32.totalorder %s13, 0
    %p111 = por %p109, %p110
    %p112 = scmp.ne.s32.totalorder %s98, %s99
    %p113 = scmp.eq.s32.totalorder %s14, 1
    %p114 = por %p112, %p113
    %p116 = scmp.ne.s32.totalorder %s99, %s115
    %p117 = scmp.eq.s32.totalorder %s14, 0
    %p118 = por %p116, %p117
    %p119 = scmp.le.s32.totalorder 1, %s8
    %p120 = scmp.lt.s32.totalorder %s8, 3
    %p121 = pnand %p119, %p120
    %p122 = pneg %p121
    // Predicated region
    $region9: #{coscls_forward.1} parent=5 // pred_check
      _
    $region10: #{coscls_forward.1} parent=5 // pred_check_branch
      %124 = sbr.rel (%p121) target = $region12
    $region11: #{coscls_forward.1} parent=5 // pred_region
      %s125 = ssub.s32 %s8, 1
      // Predicated region
      $region13: #{coscls_forward.1} parent=11 // pred_check
        %p126 = pneg %p81
      $region14: #{coscls_forward.1} parent=11 // pred_check_branch
        %128 = sbr.rel (%p126) target = $region16
      $region15: #{coscls_forward.1} parent=11 // pred_region
        %p129 = scmp.lt.s32.totalorder %s20, 0
        %s130 = scalar_select %p129, %s20, 0
        %s131 = smul.addr %s130, 2
        %s132 = scalar_lea.vmem %s1, %s131
      $region16: #{coscls_forward.1} parent=11 // pred_fallthru
        _
    $region12: #{coscls_forward.1} parent=5 // pred_fallthru
      _
    %p133 = scmp.lt.s32.totalorder %s8, 2
    // Predicated region
    $region17: #{coscls_forward.1} parent=5 // pred_check
      %p134 = pneg %p133
    $region18: #{coscls_forward.1} parent=5 // pred_check_branch
      %136 = sbr.rel (%p134) target = $region20
    $region19: #{coscls_forward.1} parent=5 // pred_region
      // Predicated region
      $region21: #{coscls_forward.1} parent=19 // pred_check
        %p137 = pneg %p49
      $region22: #{coscls_forward.1} parent=19 // pred_check_branch
        %139 = sbr.rel (%p137) target = $region24
      $region23: #{coscls_forward.1} parent=19 // pred_region
        %s140 = smul.u32 2, %s15
        %p141 = scmp.lt.s32.totalorder %s16, 1
        %s142 = scalar_select %p141, %s16, 1
        %p143 = scmp.lt.s32.totalorder %s140, 1
        %s144 = scalar_select %p143, %s140, 1
        %s145 = smul.addr %s142, 2
        %s146 = sadd.s32 %s144, %s145
        %s147 = smul.addr %s146, 4
        %s148 = scalar_lea.vmem %s0, %s147
        %s149 = smul.u32 2, %s15
      $region24: #{coscls_forward.1} parent=19 // pred_fallthru
        _
    $region20: #{coscls_forward.1} parent=5 // pred_fallthru
      _
    %p150 = scmp.le.s32.totalorder 1, %s8
    %p151 = scmp.lt.s32.totalorder %s8, 3
    %p152 = pnand %p150, %p151
    %p153 = pneg %p152
    // Predicated region
    $region25: #{coscls_forward.1} parent=5 // pred_check
      _
    $region26: #{coscls_forward.1} parent=5 // pred_check_branch
      %155 = sbr.rel (%p152) target = $region28
    $region27: #{coscls_forward.1} parent=5 // pred_region
      %s156 = ssub.s32 %s8, 1
      %s157 = smul.u32 2, %s18
      %p158 = scmp.lt.s32.totalorder %s19, 1
      %s159 = scalar_select %p158, %s19, 1
      %p160 = scmp.lt.s32.totalorder %s157, 1
      %s161 = scalar_select %p160, %s157, 1
      %s162 = smul.addr %s159, 2
      %s163 = sadd.s32 %s161, %s162
      %s164 = smul.addr %s163, 4
      %s165 = scalar_lea.vmem %s0, %s164
      %p166 = pneg %p55
      %p167 = pneg %p52
      %p168 = scmp.lt.s32.totalorder %s20, 0
      %s169 = scalar_select %p168, %s20, 0
      %s170 = smul.addr %s169, 2
      %s171 = scalar_lea.vmem %s1, %s170
      %p172 = pneg %p81
      %p173 = pneg %p78
      %p174 = pneg %p111
      %p175 = pneg %p108
      %s176 = smul.u32 2, %s18
      %p177 = scmp.lt.s32.totalorder %s19, 1
      %s178 = scalar_select %p177, %s19, 1
      %p179 = scmp.lt.s32.totalorder %s20, 0
      %s180 = scalar_select %p179, %s20, 0
      %p181 = scmp.lt.s32.totalorder %s176, 1
      %s182 = scalar_select %p181, %s176, 1
      %s183 = smul.addr %s180, 2
      %s184 = sadd.s32 %s182, %s183
      %s185 = smul.addr %s178, 2
      %s186 = sadd.s32 %s184, %s185
      %s187 = smul.addr %s186, 2
      %s188 = scalar_lea.vmem %s2, %s187
      %s189 = smul.u32 2, %s18
      %p190 = scmp.lt.s32.totalorder %s19, 1
      %s191 = scalar_select %p190, %s19, 1
      %p192 = scmp.lt.s32.totalorder %s189, 1
      %s193 = scalar_select %p192, %s189, 1
      %s194 = smul.addr %s191, 2
      %s195 = sadd.s32 %s193, %s194
      %s196 = smul.addr %s195, 4
      %s197 = scalar_lea.vmem %s0, %s196
      %s198 = smul.u32 2, %s18
      %p199 = scmp.lt.s32.totalorder %s20, 0
      %s200 = scalar_select %p199, %s20, 0
      %s201 = smul.addr %s200, 2
      %s202 = scalar_lea.vmem %s1, %s201
      %s203 = smul.u32 2, %s18
      %p204 = scmp.lt.s32.totalorder %s19, 1
      %s205 = scalar_select %p204, %s19, 1
      %p206 = scmp.lt.s32.totalorder %s20, 0
      %s207 = scalar_select %p206, %s20, 0
      %p208 = scmp.lt.s32.totalorder %s203, 1
      %s209 = scalar_select %p208, %s203, 1
      %s210 = smul.addr %s207, 2
      %s211 = sadd.s32 %s209, %s210
      %s212 = smul.addr %s205, 2
      %s213 = sadd.s32 %s211, %s212
      %s214 = smul.addr %s213, 2
      %s215 = scalar_lea.vmem %s2, %s214
      %s216 = smul.u32 2, %s18
      %v217 = vld [vmem:[%s197] sm:$0xff]
      %v218 = vmul.f32 %v217, %v217
      %v220 = vcombine.high %v218, %v218
      %vm222 = vcmask 1043456
      %v223 = vsel %vm222, %v218, 0.0
      %v224 = vrot.slane %v223, 4
      %v225 = vadd.f32 %v223, %v224
      %v226 = vrot.slane %v225, 2
      %v227 = vadd.f32 %v225, %v226
      %v228 = vrot.slane %v227, 1
      %v229 = vadd.f32 %v227, %v228
      %v230 = vsel %vm222, %v220, 0.0
      %v231 = vrot.slane %v230, 4
      %v232 = vadd.f32 %v230, %v231
      %v233 = vrot.slane %v232, 2
      %v234 = vadd.f32 %v232, %v233
      %v235 = vrot.slane %v234, 1
      %v236 = vadd.f32 %v234, %v235
      %v237 = vmax.f32 %v229, 1e-10
      %v238 = vmax.f32 %v236, 1e-10
      %v239 = vrsqrt.pop %v237
      %v240 = vrsqrt.pop %v238
      %v241 = vmul.f32 %v239, 2.0
      %v242 = vmul.f32 %v240, 2.0
      %v245 = vcombine.low %v241, %v242
      %v247 = vmul.f32 %v217, %v245
      %v248 = vld [vmem:[%s202] sm:$0x3]
      %v250 = vcombine.high %v247, %v247
      %vm251 = vcmask 31744
      %v253 = vsel %vm251, %v248, 0
      %v255 = vsel %vm222, %v247, 0
      %v257 = vsel %vm222, %v250, 0
      %259 = vmatprep.subr.mxu0 0.0
      %260 = vmatpush1.msra.mxu0 0.0
      %261 = vmatprep.subr.mxu0 0.0
      %262 = vmatpush1.msra.mxu0 0.0
      %263 = vmatprep.subr.mxu0 0.0
      %264 = vmatpush1.msra.mxu0 0.0
      %265 = vmatprep.subr.mxu0 0.0
      %266 = vmatpush1.msra.mxu0 0.0
      %267 = vmatprep.subr.mxu0 0.0
      %268 = vmatpush1.msra.mxu0 0.0
      %269 = vmatprep.subr.mxu0 0.0
      %270 = vmatpush1.msra.mxu0 0.0
      %271 = vmatprep.subr.mxu0 0.0
      %272 = vmatpush1.msra.mxu0 0.0
      %273 = vmatprep.subr.mxu0 0.0
      %274 = vmatpush1.msra.mxu0 0.0
      %275 = vmatprep.subr.mxu0 0.0
      %276 = vmatpush1.msra.mxu0 0.0
      %277 = vmatprep.subr.mxu0 0.0
      %278 = vmatpush1.msra.mxu0 0.0
      %279 = vmatprep.subr.mxu0 0.0
      %280 = vmatpush1.msra.mxu0 0.0
      %281 = vmatprep.subr.mxu0 0.0
      %282 = vmatpush1.msra.mxu0 0.0
      %283 = vmatprep.subr.mxu0 0.0
      %284 = vmatpush1.msra.mxu0 0.0
      %285 = vmatprep.subr.mxu0 0.0
      %286 = vmatpush1.msra.mxu0 0.0
      %287 = vmatprep.subr.mxu0 0.0
      %288 = vmatpush1.msra.mxu0 0.0
      %289 = vmatprep.subr.mxu0 %v257
      %290 = vmatpush1.msra.mxu0 %v255
      %291 = vmatprep.subr.mxu0 0.0
      %292 = vmatpush2.msra.mxu0 0.0
      %293 = vmatprep.subr.mxu0 0.0
      %294 = vmatpush2.msra.mxu0 0.0
      %295 = vmatprep.subr.mxu0 0.0
      %296 = vmatpush2.msra.mxu0 0.0
      %297 = vmatprep.subr.mxu0 0.0
      %298 = vmatpush2.msra.mxu0 0.0
      %299 = vmatprep.subr.mxu0 0.0
      %300 = vmatpush2.msra.mxu0 0.0
      %301 = vmatprep.subr.mxu0 0.0
      %302 = vmatpush2.msra.mxu0 0.0
      %303 = vmatprep.subr.mxu0 0.0
      %304 = vmatpush2.msra.mxu0 0.0
      %305 = vmatprep.subr.mxu0 0.0
      %306 = vmatpush2.msra.mxu0 0.0
      %307 = vmatprep.subr.mxu0 0.0
      %308 = vmatpush2.msra.mxu0 0.0
      %309 = vmatprep.subr.mxu0 0.0
      %310 = vmatpush2.msra.mxu0 0.0
      %311 = vmatprep.subr.mxu0 0.0
      %312 = vmatpush2.msra.mxu0 0.0
      %313 = vmatprep.subr.mxu0 0.0
      %314 = vmatpush2.msra.mxu0 0.0
      %315 = vmatprep.subr.mxu0 0.0
      %316 = vmatpush2.msra.mxu0 0.0
      %317 = vmatprep.subr.mxu0 0.0
      %318 = vmatpush2.msra.mxu0 0.0
      %319 = vmatprep.subr.mxu0 0.0
      %320 = vmatpush2.msra.mxu0 0.0
      %321 = vmatprep.subr.mxu0 0.0
      %322 = vmatpush2.msra.mxu0 0.0
      %323 = vmatprep.mubr.f32.mxu0 0.0
      %324 = vmatmul.mubr.f32.gmra.mxu0 %v253
      %v325 = vpop.f32.mrf.mxu0
      %v326 = vadd.f32 0.0, %v325
      %v327 = vpop.f32.mrf.mxu0
      %v328 = vadd.f32 0.0, %v327
      %329 = vdwg.mxu0
      %v332 = vcombine.low %v326, %v328
      %v334 = vunpack.c.l.s4 1983009808
      %v335 = vunpack.c.0.s8 %v334
      %v336 = vlaneseq
      %v337 = vshrl.u32 %v336, 7
      %v338 = vsub.s32 %v335, %v337
      %v339 = vrot.slane %v332, %v338
      %341 = vst [vmem:[%s215] sm:$0xf] %v339
      %s342 = smul.u32 2, %s18
      %p343 = scmp.lt.s32.totalorder %s19, 1
      %s344 = scalar_select %p343, %s19, 1
      %p345 = scmp.lt.s32.totalorder %s20, 0
      %s346 = scalar_select %p345, %s20, 0
      %p347 = scmp.lt.s32.totalorder %s342, 1
      %s348 = scalar_select %p347, %s342, 1
      %s349 = smul.addr %s346, 2
      %s350 = sadd.s32 %s348, %s349
      %s351 = smul.addr %s344, 2
      %s352 = sadd.s32 %s350, %s351
      %s353 = smul.addr %s352, 2
      %s354 = scalar_lea.vmem %s2, %s353
      // Predicated region
      $region29: #{coscls_forward.1} parent=27 // pred_check
        %p355 = pneg %p108
      $region30: #{coscls_forward.1} parent=27 // pred_check_branch
        %357 = sbr.rel (%p355) target = $region32
      $region31: #{coscls_forward.1} parent=27 // pred_region
        %s358 = smul.u32 2, %s18
      $region32: #{coscls_forward.1} parent=27 // pred_fallthru
        _
    $region28: #{coscls_forward.1} parent=5 // pred_fallthru
      _
    %p359 = scmp.le.s32.totalorder 2, %s8
    // Predicated region
    $region33: #{coscls_forward.1} parent=5 // pred_check
      %p360 = pneg %p359
    $region34: #{coscls_forward.1} parent=5 // pred_check_branch
      %362 = sbr.rel (%p360) target = $region36
    $region35: #{coscls_forward.1} parent=5 // pred_region
      %s363 = ssub.s32 %s8, 2
      // Predicated region
      $region37: #{coscls_forward.1} parent=35 // pred_check
        %p364 = pneg %p114
      $region38: #{coscls_forward.1} parent=35 // pred_check_branch
        %366 = sbr.rel (%p364) target = $region40
      $region39: #{coscls_forward.1} parent=35 // pred_region
        %s367 = smul.u32 2, %s21
        %p368 = scmp.lt.s32.totalorder %s22, 1
        %s369 = scalar_select %p368, %s22, 1
        %p370 = scmp.lt.s32.totalorder %s23, 0
        %s371 = scalar_select %p370, %s23, 0
        %p372 = scmp.lt.s32.totalorder %s367, 1
        %s373 = scalar_select %p372, %s367, 1
        %s374 = smul.addr %s371, 2
        %s375 = sadd.s32 %s373, %s374
        %s376 = smul.addr %s369, 2
        %s377 = sadd.s32 %s375, %s376
        %s378 = smul.addr %s377, 2
        %s379 = scalar_lea.vmem %s2, %s378
      $region40: #{coscls_forward.1} parent=35 // pred_fallthru
        _
    $region36: #{coscls_forward.1} parent=5 // pred_fallthru
      _
  $region6: #{coscls_forward.1} parent=0 // loop_footer
    %s12 = sadd.s32 1, %s8
  $region7: #{coscls_forward.1} parent=0 // loop_footer_branch
    %7 = sbr.rel target = $region3
  $region8: #{coscls_forward.1} parent=0 // loop_exit
    _

</llo_original>
